<compile_context>
chip_gen: v5e
topology: v5e:2x2
jax: 0.10.0
libtpu: 0.0.40
codegen_flags: <defaults>
</compile_context>

<pallas_src>
import functools

import jax
import jax.numpy as jnp
from jax import lax
from jax.experimental import pallas as pl
from jax.experimental.pallas import tpu as pltpu

_LANE = 128


def _nonsep_conv2d_kernel(filt_ref, x_ref, o_ref, *, F, fw, fh, Wo, SH):
    """filt_ref: SMEM (F*fw*fh,) f32 taps.
    x_ref: VMEM (H, W, TL) -- full image, lane axis = fused N*C tile.
    o_ref: VMEM (SH, F, Wo, TL) -- one strip of SH output rows."""
    _, W, TL = x_ref.shape
    n_lg = TL // _LANE
    row0 = pl.program_id(1) * SH            # first output row of this strip

    # Hoist all scalar taps out of the loops (cheap SMEM reads, loop-invariant).
    taps = [filt_ref[i] for i in range(F * fw * fh)]

    def row_body(r, carry):
        # One output row at a time; accumulators live in vregs across all taps
        # and are stored once per (filter, lane group).
        for g in range(n_lg):
            lanes = pl.ds(g * _LANE, _LANE)
            # TODO(synk): for very wide images (W >> 64) additionally sub-tile W
            # here so F * ceil(W/8) accumulator vregs stay within the register file.
            acc = [jnp.zeros((Wo, _LANE), jnp.float32) for _ in range(F)]
            for u in range(fw):
                # Load one full-width input row, cast at point of use.
                row = x_ref[row0 + r + u, :, lanes].astype(jnp.float32)   # (W, 128)
                for v in range(fh):
                    # Static sublane-offset window of the register-resident row.
                    # TODO(synk): if the bundle dump shows realignment copies here,
                    # switch to a pltpu.roll on the sublane axis + crop at the store.
                    win = row[v:v + Wo, :]
                    for f in range(F):
                        acc[f] = acc[f] + taps[f * fw * fh + u * fh + v] * win
            for f in range(F):
                o_ref[r, f, :, lanes] = acc[f].astype(o_ref.dtype)
        return carry

    lax.fori_loop(0, SH, row_body, 0)


def _vmem_need_bytes(H, W, TL, F, SH, Wo, fw, in_esize, out_esize):
    x_block = H * W * TL * in_esize                 # full image per lane tile
    o_block = SH * F * Wo * TL * out_esize          # one output row strip
    # per-row working set (f32 accumulators + loaded rows) + Mosaic-internal slack
    scratch = (F + fw) * W * _LANE * 4 + (1 << 20)
    return 2 * x_block + 2 * o_block + scratch      # double-buffered blocks


def _pick_lane_tile(NCp, H, W, F, Ho, Wo, fw, in_esize, out_esize,
                    vmem_budget_bytes=40 * 1024 * 1024):
    """Largest lane tile (multiple of 128 dividing NCp) whose double-buffered
    blocks fit a budget that is safe for v7x (64 MiB/TC) as well as v5e/v6e."""
    for tl in (1024, 512, 256, 128):
        if NCp % tl:
            continue
        if _vmem_need_bytes(H, W, tl, F, Ho, Wo, fw,
                            in_esize, out_esize) <= vmem_budget_bytes:
            return tl
    # TODO(synk): for very large H*W even TL=128 can exceed VMEM; add a manual
    # halo-DMA path over H strips (memory_space=pl.ANY + pltpu.make_async_copy).
    return 128


def _pick_row_strips(Ho, lane_steps, min_rows=4, target_steps=4):
    """Split Ho into strips so the grid has enough steps for both v7x TensorCores
    (>= 2) and some pipeline overlap (>= target_steps), without ragged blocks."""
    divisors = [d for d in range(1, Ho + 1) if Ho % d == 0]
    for s in divisors:
        if lane_steps * s >= target_steps and Ho // s >= min_rows:
            return s
    for s in divisors:
        if lane_steps * s >= 2:
            return s
    return 1


def nonsep_conv2d(x, filters):
    """x: (N, C, H, W), filters: (F, fw, fh) ->
    (N, C*F, H-fw+1, W-fh+1)  (torch grouped conv, groups=C)."""
    N, C, H, W = x.shape
    F, fw, fh = filters.shape
    Ho, Wo = H - fw + 1, W - fh + 1
    NC = N * C

    # Lane-dense layout: (N*C, H, W) -> (H, W, N*C), pad fused axis to 128.
    # TODO(synk): if the surrounding graph can produce/consume this lane-dense
    # layout directly, drop these wrapper transposes (full extra HBM passes).
    xr = jnp.transpose(x.reshape(NC, H, W), (1, 2, 0))      # (H, W, NC)
    NCp = ((NC + _LANE - 1) // _LANE) * _LANE
    if NCp != NC:
        xr = jnp.pad(xr, ((0, 0), (0, 0), (0, NCp - NC)))

    in_esize = xr.dtype.itemsize
    out_esize = x.dtype.itemsize
    TL = _pick_lane_tile(NCp, H, W, F, Ho, Wo, fw, in_esize, out_esize)
    lane_steps = NCp // TL
    strips = _pick_row_strips(Ho, lane_steps)
    SH = Ho // strips
    grid = (lane_steps, strips)

    need = _vmem_need_bytes(H, W, TL, F, SH, Wo, fw, in_esize, out_esize)
    vmem_limit = int(min(max(need + need // 4 + (4 << 20), 16 << 20), 48 << 20))

    filt_flat = filters.reshape(F * fw * fh).astype(jnp.float32)

    kernel = functools.partial(_nonsep_conv2d_kernel,
                               F=F, fw=fw, fh=fh, Wo=Wo, SH=SH)

    out = pl.pallas_call(
        kernel,
        out_shape=jax.ShapeDtypeStruct((Ho, F, Wo, NCp), x.dtype),
        grid=grid,
        in_specs=[
            # tiny filter-tap vector stays in SMEM (scalar reads in-kernel)
            pl.BlockSpec(memory_space=pltpu.MemorySpace.SMEM),
            # full image per lane tile; constant along the strip axis, so the
            # block stays resident (no re-DMA) across strips of one lane tile
            pl.BlockSpec((H, W, TL), lambda l, s: (0, 0, l)),
        ],
        out_specs=pl.BlockSpec((SH, F, Wo, TL), lambda l, s: (s, 0, 0, l)),
        compiler_params=pltpu.CompilerParams(
            dimension_semantics=("parallel", "parallel"),
            vmem_limit_bytes=vmem_limit),
    )(filt_flat, xr)

    # (Ho, F, Wo, NCp) -> drop lane padding -> (N, C*F, Ho, Wo)
    out = out[..., :NC]
    out = jnp.transpose(out, (3, 1, 0, 2))                  # (NC, F, Ho, Wo)
    return out.reshape(N, C, F, Ho, Wo).reshape(N, C * F, Ho, Wo)


def _reference(x, filters):
    # pure-JAX reference of the torch grouped conv for validation
    N, C, H, W = x.shape
    F, fw, fh = filters.shape
    w = jnp.tile(filters.reshape(F, 1, fw, fh), (C, 1, 1, 1))  # (C*F,1,fw,fh)
    return jax.lax.conv_general_dilated(
        x, w, window_strides=(1, 1), padding="VALID",
        dimension_numbers=("NCHW", "OIHW", "NCHW"),
        feature_group_count=C)


if __name__ == "__main__":
    key = jax.random.PRNGKey(0)
    kx, kf = jax.random.split(key)

    N, C, H, W = 2, 4, 16, 16
    F, fw, fh = 3, 3, 3

    x = jax.random.normal(kx, (N, C, H, W), dtype=jnp.float32)
    filters = jax.random.normal(kf, (F, fw, fh), dtype=jnp.float32)

    out = jax.block_until_ready(nonsep_conv2d(x, filters))

    ref = _reference(x, filters)
    assert out.shape == (N, C * F, H - fw + 1, W - fh + 1), out.shape
    assert jnp.allclose(out, ref, atol=1e-4, rtol=1e-4), "mismatch vs reference"

    print("KERNEL_OK")
</pallas_src>

<mosaic_0001>
module attributes {stable_mosaic.version = 11 : i64} {
  func.func @_nonsep_conv2d_kernel(%arg0: i32, %arg1: i32, %arg2: memref<27xf32, #tpu.memory_space<smem>>, %arg3: memref<16x16x128xf32, #tpu.memory_space<vmem>>, %arg4: memref<7x3x14x128xf32, #tpu.memory_space<vmem>>) attributes {dimension_semantics = [#tpu.dimension_semantics<parallel>, #tpu.dimension_semantics<parallel>], iteration_bounds = array<i64: 1, 2>, scalar_prefetch = 0 : i64, scratch_operands = 0 : i64, tpu.core_type = #tpu.core_type<tc>, window_params = [{transform_indices = @transform_0, window_bounds = array<i64: 27>}, {transform_indices = @transform_1, window_bounds = array<i64: 16, 16, 128>}, {transform_indices = @transform_2, window_bounds = array<i64: 7, 3, 14, 128>}]} {
    %c7_i32 = arith.constant 7 : i32
    %0 = arith.muli %arg1, %c7_i32 : i32
    %c0 = arith.constant 0 : index
    %1 = memref.load %arg2[%c0] : memref<27xf32, #tpu.memory_space<smem>>
    %c1 = arith.constant 1 : index
    %2 = memref.load %arg2[%c1] : memref<27xf32, #tpu.memory_space<smem>>
    %c2 = arith.constant 2 : index
    %3 = memref.load %arg2[%c2] : memref<27xf32, #tpu.memory_space<smem>>
    %c3 = arith.constant 3 : index
    %4 = memref.load %arg2[%c3] : memref<27xf32, #tpu.memory_space<smem>>
    %c4 = arith.constant 4 : index
    %5 = memref.load %arg2[%c4] : memref<27xf32, #tpu.memory_space<smem>>
    %c5 = arith.constant 5 : index
    %6 = memref.load %arg2[%c5] : memref<27xf32, #tpu.memory_space<smem>>
    %c6 = arith.constant 6 : index
    %7 = memref.load %arg2[%c6] : memref<27xf32, #tpu.memory_space<smem>>
    %c7 = arith.constant 7 : index
    %8 = memref.load %arg2[%c7] : memref<27xf32, #tpu.memory_space<smem>>
    %c8 = arith.constant 8 : index
    %9 = memref.load %arg2[%c8] : memref<27xf32, #tpu.memory_space<smem>>
    %c9 = arith.constant 9 : index
    %10 = memref.load %arg2[%c9] : memref<27xf32, #tpu.memory_space<smem>>
    %c10 = arith.constant 10 : index
    %11 = memref.load %arg2[%c10] : memref<27xf32, #tpu.memory_space<smem>>
    %c11 = arith.constant 11 : index
    %12 = memref.load %arg2[%c11] : memref<27xf32, #tpu.memory_space<smem>>
    %c12 = arith.constant 12 : index
    %13 = memref.load %arg2[%c12] : memref<27xf32, #tpu.memory_space<smem>>
    %c13 = arith.constant 13 : index
    %14 = memref.load %arg2[%c13] : memref<27xf32, #tpu.memory_space<smem>>
    %c14 = arith.constant 14 : index
    %15 = memref.load %arg2[%c14] : memref<27xf32, #tpu.memory_space<smem>>
    %c15 = arith.constant 15 : index
    %16 = memref.load %arg2[%c15] : memref<27xf32, #tpu.memory_space<smem>>
    %c16 = arith.constant 16 : index
    %17 = memref.load %arg2[%c16] : memref<27xf32, #tpu.memory_space<smem>>
    %c17 = arith.constant 17 : index
    %18 = memref.load %arg2[%c17] : memref<27xf32, #tpu.memory_space<smem>>
    %c18 = arith.constant 18 : index
    %19 = memref.load %arg2[%c18] : memref<27xf32, #tpu.memory_space<smem>>
    %c19 = arith.constant 19 : index
    %20 = memref.load %arg2[%c19] : memref<27xf32, #tpu.memory_space<smem>>
    %c20 = arith.constant 20 : index
    %21 = memref.load %arg2[%c20] : memref<27xf32, #tpu.memory_space<smem>>
    %c21 = arith.constant 21 : index
    %22 = memref.load %arg2[%c21] : memref<27xf32, #tpu.memory_space<smem>>
    %c22 = arith.constant 22 : index
    %23 = memref.load %arg2[%c22] : memref<27xf32, #tpu.memory_space<smem>>
    %c23 = arith.constant 23 : index
    %24 = memref.load %arg2[%c23] : memref<27xf32, #tpu.memory_space<smem>>
    %c24 = arith.constant 24 : index
    %25 = memref.load %arg2[%c24] : memref<27xf32, #tpu.memory_space<smem>>
    %c25 = arith.constant 25 : index
    %26 = memref.load %arg2[%c25] : memref<27xf32, #tpu.memory_space<smem>>
    %c26 = arith.constant 26 : index
    %27 = memref.load %arg2[%c26] : memref<27xf32, #tpu.memory_space<smem>>
    %c0_i32 = arith.constant 0 : i32
    %c7_i32_0 = arith.constant 7 : i32
    %28 = arith.addi %c0_i32, %c7_i32_0 : i32
    %c1_i32 = arith.constant 1 : i32
    scf.for %arg5 = %c0_i32 to %28 step %c1_i32  : i32 {
      %cst = arith.constant 0.000000e+00 : f32
      %29 = vector.broadcast %cst : f32 to vector<14x128xf32>
      %cst_2 = arith.constant 0.000000e+00 : f32
      %30 = vector.broadcast %cst_2 : f32 to vector<14x128xf32>
      %cst_3 = arith.constant 0.000000e+00 : f32
      %31 = vector.broadcast %cst_3 : f32 to vector<14x128xf32>
      %32 = arith.addi %0, %arg5 : i32
      %c0_i32_4 = arith.constant 0 : i32
      %33 = arith.addi %32, %c0_i32_4 : i32
      %34 = arith.index_cast %33 : i32 to index
      %c0_5 = arith.constant 0 : index
      %c0_6 = arith.constant 0 : index
      %35 = vector.load %arg3[%34, %c0_5, %c0_6] : memref<16x16x128xf32, #tpu.memory_space<vmem>>, vector<1x16x128xf32>
      %36 = vector.shape_cast %35 : vector<1x16x128xf32> to vector<16x128xf32>
      %37 = vector.extract_strided_slice %36 {offsets = [0, 0], sizes = [14, 128], strides = [1, 1]} : vector<16x128xf32> to vector<14x128xf32>
      %38 = vector.broadcast %1 : f32 to vector<14x128xf32>
      %39 = arith.mulf %38, %37 : vector<14x128xf32>
      %40 = arith.addf %29, %39 : vector<14x128xf32>
      %41 = vector.broadcast %10 : f32 to vector<14x128xf32>
      %42 = arith.mulf %41, %37 : vector<14x128xf32>
      %43 = arith.addf %30, %42 : vector<14x128xf32>
      %44 = vector.broadcast %19 : f32 to vector<14x128xf32>
      %45 = arith.mulf %44, %37 : vector<14x128xf32>
      %46 = arith.addf %31, %45 : vector<14x128xf32>
      %47 = vector.extract_strided_slice %36 {offsets = [1, 0], sizes = [14, 128], strides = [1, 1]} : vector<16x128xf32> to vector<14x128xf32>
      %48 = vector.broadcast %2 : f32 to vector<14x128xf32>
      %49 = arith.mulf %48, %47 : vector<14x128xf32>
      %50 = arith.addf %40, %49 : vector<14x128xf32>
      %51 = vector.broadcast %11 : f32 to vector<14x128xf32>
      %52 = arith.mulf %51, %47 : vector<14x128xf32>
      %53 = arith.addf %43, %52 : vector<14x128xf32>
      %54 = vector.broadcast %20 : f32 to vector<14x128xf32>
      %55 = arith.mulf %54, %47 : vector<14x128xf32>
      %56 = arith.addf %46, %55 : vector<14x128xf32>
      %57 = vector.extract_strided_slice %36 {offsets = [2, 0], sizes = [14, 128], strides = [1, 1]} : vector<16x128xf32> to vector<14x128xf32>
      %58 = vector.broadcast %3 : f32 to vector<14x128xf32>
      %59 = arith.mulf %58, %57 : vector<14x128xf32>
      %60 = arith.addf %50, %59 : vector<14x128xf32>
      %61 = vector.broadcast %12 : f32 to vector<14x128xf32>
      %62 = arith.mulf %61, %57 : vector<14x128xf32>
      %63 = arith.addf %53, %62 : vector<14x128xf32>
      %64 = vector.broadcast %21 : f32 to vector<14x128xf32>
      %65 = arith.mulf %64, %57 : vector<14x128xf32>
      %66 = arith.addf %56, %65 : vector<14x128xf32>
      %67 = arith.addi %0, %arg5 : i32
      %c1_i32_7 = arith.constant 1 : i32
      %68 = arith.addi %67, %c1_i32_7 : i32
      %69 = arith.index_cast %68 : i32 to index
      %c0_8 = arith.constant 0 : index
      %c0_9 = arith.constant 0 : index
      %70 = vector.load %arg3[%69, %c0_8, %c0_9] : memref<16x16x128xf32, #tpu.memory_space<vmem>>, vector<1x16x128xf32>
      %71 = vector.shape_cast %70 : vector<1x16x128xf32> to vector<16x128xf32>
      %72 = vector.extract_strided_slice %71 {offsets = [0, 0], sizes = [14, 128], strides = [1, 1]} : vector<16x128xf32> to vector<14x128xf32>
      %73 = vector.broadcast %4 : f32 to vector<14x128xf32>
      %74 = arith.mulf %73, %72 : vector<14x128xf32>
      %75 = arith.addf %60, %74 : vector<14x128xf32>
      %76 = vector.broadcast %13 : f32 to vector<14x128xf32>
      %77 = arith.mulf %76, %72 : vector<14x128xf32>
      %78 = arith.addf %63, %77 : vector<14x128xf32>
      %79 = vector.broadcast %22 : f32 to vector<14x128xf32>
      %80 = arith.mulf %79, %72 : vector<14x128xf32>
      %81 = arith.addf %66, %80 : vector<14x128xf32>
      %82 = vector.extract_strided_slice %71 {offsets = [1, 0], sizes = [14, 128], strides = [1, 1]} : vector<16x128xf32> to vector<14x128xf32>
      %83 = vector.broadcast %5 : f32 to vector<14x128xf32>
      %84 = arith.mulf %83, %82 : vector<14x128xf32>
      %85 = arith.addf %75, %84 : vector<14x128xf32>
      %86 = vector.broadcast %14 : f32 to vector<14x128xf32>
      %87 = arith.mulf %86, %82 : vector<14x128xf32>
      %88 = arith.addf %78, %87 : vector<14x128xf32>
      %89 = vector.broadcast %23 : f32 to vector<14x128xf32>
      %90 = arith.mulf %89, %82 : vector<14x128xf32>
      %91 = arith.addf %81, %90 : vector<14x128xf32>
      %92 = vector.extract_strided_slice %71 {offsets = [2, 0], sizes = [14, 128], strides = [1, 1]} : vector<16x128xf32> to vector<14x128xf32>
      %93 = vector.broadcast %6 : f32 to vector<14x128xf32>
      %94 = arith.mulf %93, %92 : vector<14x128xf32>
      %95 = arith.addf %85, %94 : vector<14x128xf32>
      %96 = vector.broadcast %15 : f32 to vector<14x128xf32>
      %97 = arith.mulf %96, %92 : vector<14x128xf32>
      %98 = arith.addf %88, %97 : vector<14x128xf32>
      %99 = vector.broadcast %24 : f32 to vector<14x128xf32>
      %100 = arith.mulf %99, %92 : vector<14x128xf32>
      %101 = arith.addf %91, %100 : vector<14x128xf32>
      %102 = arith.addi %0, %arg5 : i32
      %c2_i32 = arith.constant 2 : i32
      %103 = arith.addi %102, %c2_i32 : i32
      %104 = arith.index_cast %103 : i32 to index
      %c0_10 = arith.constant 0 : index
      %c0_11 = arith.constant 0 : index
      %105 = vector.load %arg3[%104, %c0_10, %c0_11] : memref<16x16x128xf32, #tpu.memory_space<vmem>>, vector<1x16x128xf32>
      %106 = vector.shape_cast %105 : vector<1x16x128xf32> to vector<16x128xf32>
      %107 = vector.extract_strided_slice %106 {offsets = [0, 0], sizes = [14, 128], strides = [1, 1]} : vector<16x128xf32> to vector<14x128xf32>
      %108 = vector.broadcast %7 : f32 to vector<14x128xf32>
      %109 = arith.mulf %108, %107 : vector<14x128xf32>
      %110 = arith.addf %95, %109 : vector<14x128xf32>
      %111 = vector.broadcast %16 : f32 to vector<14x128xf32>
      %112 = arith.mulf %111, %107 : vector<14x128xf32>
      %113 = arith.addf %98, %112 : vector<14x128xf32>
      %114 = vector.broadcast %25 : f32 to vector<14x128xf32>
      %115 = arith.mulf %114, %107 : vector<14x128xf32>
      %116 = arith.addf %101, %115 : vector<14x128xf32>
      %117 = vector.extract_strided_slice %106 {offsets = [1, 0], sizes = [14, 128], strides = [1, 1]} : vector<16x128xf32> to vector<14x128xf32>
      %118 = vector.broadcast %8 : f32 to vector<14x128xf32>
      %119 = arith.mulf %118, %117 : vector<14x128xf32>
      %120 = arith.addf %110, %119 : vector<14x128xf32>
      %121 = vector.broadcast %17 : f32 to vector<14x128xf32>
      %122 = arith.mulf %121, %117 : vector<14x128xf32>
      %123 = arith.addf %113, %122 : vector<14x128xf32>
      %124 = vector.broadcast %26 : f32 to vector<14x128xf32>
      %125 = arith.mulf %124, %117 : vector<14x128xf32>
      %126 = arith.addf %116, %125 : vector<14x128xf32>
      %127 = vector.extract_strided_slice %106 {offsets = [2, 0], sizes = [14, 128], strides = [1, 1]} : vector<16x128xf32> to vector<14x128xf32>
      %128 = vector.broadcast %9 : f32 to vector<14x128xf32>
      %129 = arith.mulf %128, %127 : vector<14x128xf32>
      %130 = arith.addf %120, %129 : vector<14x128xf32>
      %131 = vector.broadcast %18 : f32 to vector<14x128xf32>
      %132 = arith.mulf %131, %127 : vector<14x128xf32>
      %133 = arith.addf %123, %132 : vector<14x128xf32>
      %134 = vector.broadcast %27 : f32 to vector<14x128xf32>
      %135 = arith.mulf %134, %127 : vector<14x128xf32>
      %136 = arith.addf %126, %135 : vector<14x128xf32>
      %137 = arith.index_cast %arg5 : i32 to index
      %c0_12 = arith.constant 0 : index
      %c0_13 = arith.constant 0 : index
      %c0_14 = arith.constant 0 : index
      %138 = vector.load %arg4[%137, %c0_12, %c0_13, %c0_14] : memref<7x3x14x128xf32, #tpu.memory_space<vmem>>, vector<1x1x14x128xf32>
      %139 = vector.shape_cast %138 : vector<1x1x14x128xf32> to vector<14x128xf32>
      %140 = vector.shape_cast %130 : vector<14x128xf32> to vector<1x1x14x128xf32>
      tpu.vector_store %arg4[%137, %c0_12, %c0_13, %c0_14], %140 {strides = array<i32>} : memref<7x3x14x128xf32, #tpu.memory_space<vmem>>, vector<1x1x14x128xf32>,
      %141 = arith.index_cast %arg5 : i32 to index
      %c1_15 = arith.constant 1 : index
      %c0_16 = arith.constant 0 : index
      %c0_17 = arith.constant 0 : index
      %142 = vector.load %arg4[%141, %c1_15, %c0_16, %c0_17] : memref<7x3x14x128xf32, #tpu.memory_space<vmem>>, vector<1x1x14x128xf32>
      %143 = vector.shape_cast %142 : vector<1x1x14x128xf32> to vector<14x128xf32>
      %144 = vector.shape_cast %133 : vector<14x128xf32> to vector<1x1x14x128xf32>
      tpu.vector_store %arg4[%141, %c1_15, %c0_16, %c0_17], %144 {strides = array<i32>} : memref<7x3x14x128xf32, #tpu.memory_space<vmem>>, vector<1x1x14x128xf32>,
      %145 = arith.index_cast %arg5 : i32 to index
      %c2_18 = arith.constant 2 : index
      %c0_19 = arith.constant 0 : index
      %c0_20 = arith.constant 0 : index
      %146 = vector.load %arg4[%145, %c2_18, %c0_19, %c0_20] : memref<7x3x14x128xf32, #tpu.memory_space<vmem>>, vector<1x1x14x128xf32>
      %147 = vector.shape_cast %146 : vector<1x1x14x128xf32> to vector<14x128xf32>
      %148 = vector.shape_cast %136 : vector<14x128xf32> to vector<1x1x14x128xf32>
      tpu.vector_store %arg4[%145, %c2_18, %c0_19, %c0_20], %148 {strides = array<i32>} : memref<7x3x14x128xf32, #tpu.memory_space<vmem>>, vector<1x1x14x128xf32>,
    }
    %c7_i32_1 = arith.constant 7 : i32
    return
  }
  func.func @transform_0(%arg0: i32, %arg1: i32) -> i32 {
    %c0_i32 = arith.constant 0 : i32
    %c0_i32_0 = arith.constant 0 : i32
    return %c0_i32 : i32
  }
  func.func @transform_1(%arg0: i32, %arg1: i32) -> (i32, i32, i32) {
    %c0_i32 = arith.constant 0 : i32
    %c0_i32_0 = arith.constant 0 : i32
    %c0_i32_1 = arith.constant 0 : i32
    return %c0_i32, %c0_i32_0, %arg0 : i32, i32, i32
  }
  func.func @transform_2(%arg0: i32, %arg1: i32) -> (i32, i32, i32, i32) {
    %c0_i32 = arith.constant 0 : i32
    %c0_i32_0 = arith.constant 0 : i32
    %c0_i32_1 = arith.constant 0 : i32
    return %arg1, %c0_i32, %c0_i32_0, %arg0 : i32, i32, i32, i32
  }
}

</mosaic_0001>

<llo_original>
// kernel: tpu_custom_call.1
$region0: #{tpu_custom_call.1}
  #allocation0 [shape = 'u32[]', space=smem, size = 0x4, offset = 0x4, fixed_abs, tag = 'smem constant byte address 0x4 - core index']
  #allocation1 [shape = 'u32[72,128]{1,0:T(1,128)}', space=vmem, size = 0x9000, scoped, tag = 'internal scratch']
  %s0 = inlined_call_operand.hbm [shape: f32[27], index: 0, kind: input, shape index: {}]
  %s1 = inlined_call_operand.hbm [shape: f32[16,16,128], index: 1, kind: input, shape index: {}]
  %s2 = inlined_call_operand.hbm [shape: f32[14,3,14,128], index: 2, kind: output, shape index: {}]
  %s3 = sld [smem:[#allocation0]]
  $region56: #{tpu_custom_call.1} parent=0
    _
  %s5 = ssub.s32 1, %s3
  %s6 = scalar_select 0, %s5, %s3
  $region1: #{tpu_custom_call.1} parent=0
    #allocation2 [shape = 'u8[512]{0}', space=smem, size = 0x200, scoped, tag = 'input window, operand 0, single buffered']
    #allocation3 [shape = 's32[2]{0}', space=sflag, size = 0x8, scoped, tag = 'scoped memory for tpu_custom_call.1']
    #allocation4 [shape = 's32[2]{0}', space=sflag, size = 0x8, scoped, tag = 'scoped memory for tpu_custom_call.1']
    #allocation5 [shape = 's32[2]{0}', space=sflag, size = 0x8, scoped, tag = 'scoped memory for tpu_custom_call.1']
    #allocation6 [shape = 'u8[131072]{0}', space=vmem, size = 0x20000, scoped, tag = 'input window, operand 1, single buffered']
    #allocation7 [shape = 'u8[344064]{0}', space=vmem, size = 0x54000, scoped, tag = 'output window, operand 0']
    %7 = vsyncpa [#allocation5], 0
    %8 = vsyncpa [#allocation3], 0
    %9 = vsyncpa [#allocation4], 0
    %s10 = scalar_lea.sflag [#allocation4], 1
    %11 = vsyncpa %s10, 0
    loop: start=0, step=1, limit=4
    $region2: #{tpu_custom_call.1} parent=1 // loop_pre_header
      _
    $region3: #{tpu_custom_call.1} parent=1 // loop_header
      %s13 = sphi 0, %s17
      %p14 = scmp.ge.s32.totalorder %s13, 4
      %s20 = sphi 0, %s32
      %s21 = sphi 0, %s28
      %s22 = sphi 0, %s20
      %s23 = sphi 0, %s21
      %s24 = sphi 0, %s22
      %s25 = sphi 0, %s23
      %s33 = sphi 0, %s33
      %s35 = sphi 0, %s33
      %s36 = sphi 0, %s35
      %s50 = sphi 0, %s36
      %s56 = sphi 0, %s58
      %s59 = sphi 0, %s56
      %s60 = sphi 0, %s59
      %s76 = sphi 0, %s60
      %s84 = sphi 0, %s86
      %s87 = sphi 0, %s84
      %s88 = sphi 0, %s87
      %s104 = sphi 0, %s88
    $region4: #{tpu_custom_call.1} parent=1 // loop_header_branch
      %16 = sbr.rel (%p14) target = $region8
    $region5: #{tpu_custom_call.1} parent=1 // loop_body
      %s18 = ssub.s32 %s13, 1
      %s19 = ssub.s32 %s13, 2
      %s26 = sadd.s32 1, %s21
      %p27 = scmp.ge.s32.totalorder %s26, 2
      %s28 = scalar_select %p27, 0, %s26
      %s29 = sadd.s32 1, %s20
      %s30 = scalar_select %p27, %s29, %s20
      %p31 = scmp.ge.s32.totalorder %s30, 1
      %s32 = scalar_select %p31, 0, %s30
      %s34 = sadd.s32 %s33, 1
      %p37 = scmp.eq.s32.totalorder %s13, 1
      %p38 = scmp.ne.s32.totalorder %s33, %s35
      %p39 = scmp.eq.s32.totalorder %s13, 0
      %p40 = por %p38, %p39
      %p41 = scmp.ne.s32.totalorder %s33, %s35
      %p42 = scmp.eq.s32.totalorder %s18, 1
      %p43 = por %p41, %p42
      %p44 = scmp.ne.s32.totalorder %s35, %s36
      %p45 = scmp.eq.s32.totalorder %s18, 0
      %p46 = por %p44, %p45
      %p47 = scmp.ne.s32.totalorder %s35, %s36
      %p48 = scmp.eq.s32.totalorder %s19, 1
      %p49 = por %p47, %p48
      %p51 = scmp.ne.s32.totalorder %s36, %s50
      %p52 = scmp.eq.s32.totalorder %s19, 0
      %p53 = por %p51, %p52
      %s54 = ssub.s32 %s20, %s32
      %p55 = scmp.eq.s32.totalorder %s54, 0
      %s57 = sadd.s32 %s56, 1
      %s58 = scalar_select %p55, %s56, %s57
      %p61 = pneg %p55
      %p62 = scmp.eq.s32.totalorder %s13, 1
      %p63 = por %p61, %p62
      %p64 = scmp.ne.s32.totalorder %s56, %s59
      %p65 = scmp.eq.s32.totalorder %s13, 0
      %p66 = por %p64, %p65
      %p67 = scmp.ne.s32.totalorder %s56, %s59
      %p68 = scmp.eq.s32.totalorder %s18, 1
      %p69 = por %p67, %p68
      %p70 = scmp.ne.s32.totalorder %s59, %s60
      %p71 = scmp.eq.s32.totalorder %s18, 0
      %p72 = por %p70, %p71
      %p73 = scmp.ne.s32.totalorder %s59, %s60
      %p74 = scmp.eq.s32.totalorder %s19, 1
      %p75 = por %p73, %p74
      %p77 = scmp.ne.s32.totalorder %s60, %s76
      %p78 = scmp.eq.s32.totalorder %s19, 0
      %p79 = por %p77, %p78
      %s80 = ssub.s32 %s21, %s28
      %s81 = ssub.s32 %s20, %s32
      %s82 = sor.u32 %s80, %s81
      %p83 = scmp.eq.s32.totalorder %s82, 0
      %s85 = sadd.s32 %s84, 1
      %s86 = scalar_select %p83, %s84, %s85
      %p89 = pneg %p83
      %p90 = scmp.eq.s32.totalorder %s13, 1
      %p91 = por %p89, %p90
      %p92 = scmp.ne.s32.totalorder %s84, %s87
      %p93 = scmp.eq.s32.totalorder %s13, 0
      %p94 = por %p92, %p93
      %p95 = scmp.ne.s32.totalorder %s84, %s87
      %p96 = scmp.eq.s32.totalorder %s18, 1
      %p97 = por %p95, %p96
      %p98 = scmp.ne.s32.totalorder %s87, %s88
      %p99 = scmp.eq.s32.totalorder %s18, 0
      %p100 = por %p98, %p99
      %p101 = scmp.ne.s32.totalorder %s87, %s88
      %p102 = scmp.eq.s32.totalorder %s19, 1
      %p103 = por %p101, %p102
      %p105 = scmp.ne.s32.totalorder %s88, %s104
      %p106 = scmp.eq.s32.totalorder %s19, 0
      %p107 = por %p105, %p106
      %p108 = scmp.le.s32.totalorder 1, %s13
      %p109 = scmp.lt.s32.totalorder %s13, 3
      %p110 = pnand %p108, %p109
      %p111 = pneg %p110
      // Predicated region
      $region9: #{tpu_custom_call.1} parent=5 // pred_check
        _
      $region10: #{tpu_custom_call.1} parent=5 // pred_check_branch
        %113 = sbr.rel (%p110) target = $region12
      $region11: #{tpu_custom_call.1} parent=5 // pred_region
        %s114 = ssub.s32 %s13, 1
        // Predicated region
        $region13: #{tpu_custom_call.1} parent=11 // pred_check
          %p115 = pneg %p46
        $region14: #{tpu_custom_call.1} parent=11 // pred_check_branch
          %117 = sbr.rel (%p115) target = $region16
        $region15: #{tpu_custom_call.1} parent=11 // pred_region
          %119 = vsyncadd [#allocation5], 0
          %s121 = sshll.u32 %s0, 4
          %s122 = int_to_ptr.hbm [resolvable:$true] %s121
          %124 = dma.hbm_to_smem %s122, 16, [#allocation2], [#allocation5]
        $region16: #{tpu_custom_call.1} parent=11 // pred_fallthru
          _
        // Predicated region
        $region17: #{tpu_custom_call.1} parent=11 // pred_check
          %p125 = pneg %p72
        $region18: #{tpu_custom_call.1} parent=11 // pred_check_branch
          %127 = sbr.rel (%p125) target = $region20
        $region19: #{tpu_custom_call.1} parent=11 // pred_region
          %129 = vsyncadd [#allocation3], 0
          %s130 = smul.addr %s22, 8
          %s131 = scalar_lea.hbm %s1, %s130
          %s132 = sshll.u32 %s131, 4
          %s133 = int_to_ptr.hbm [resolvable:$true] %s132
          %s134 = sshll.u32 [#allocation6], 4
          %s135 = int_to_ptr.vmem [resolvable:$true] %s134
          %140 = dma.hbm_to_vmem [thread:$0]  %s133, 4096, %s135, [#allocation3], 128, 128, 8
        $region20: #{tpu_custom_call.1} parent=11 // pred_fallthru
          _
      $region12: #{tpu_custom_call.1} parent=5 // pred_fallthru
        _
      %p141 = scmp.lt.s32.totalorder %s13, 2
      // Predicated region
      $region21: #{tpu_custom_call.1} parent=5 // pred_check
        %p142 = pneg %p141
      $region22: #{tpu_custom_call.1} parent=5 // pred_check_branch
        %144 = sbr.rel (%p142) target = $region24
      $region23: #{tpu_custom_call.1} parent=5 // pred_region
        _
      $region24: #{tpu_custom_call.1} parent=5 // pred_fallthru
        _
      %p145 = scmp.le.s32.totalorder 1, %s13
      %p146 = scmp.lt.s32.totalorder %s13, 3
      %p147 = pnand %p145, %p146
      %p148 = pneg %p147
      // Predicated region
      $region25: #{tpu_custom_call.1} parent=5 // pred_check
        _
      $region26: #{tpu_custom_call.1} parent=5 // pred_check_branch
        %150 = sbr.rel (%p147) target = $region28
      $region27: #{tpu_custom_call.1} parent=5 // pred_region
        %s151 = ssub.s32 %s13, 1
        // Predicated region
        $region29: #{tpu_custom_call.1} parent=27 // pred_check
          %p152 = pneg %p46
        $region30: #{tpu_custom_call.1} parent=27 // pred_check_branch
          %154 = sbr.rel (%p152) target = $region32
        $region31: #{tpu_custom_call.1} parent=27 // pred_region
          %156 = dma.done [#allocation5], 16
        $region32: #{tpu_custom_call.1} parent=27 // pred_fallthru
          _
        // Predicated region
        $region33: #{tpu_custom_call.1} parent=27 // pred_check
          %p157 = pneg %p72
        $region34: #{tpu_custom_call.1} parent=27 // pred_check_branch
          %159 = sbr.rel (%p157) target = $region36
        $region35: #{tpu_custom_call.1} parent=27 // pred_region
          %161 = dma.done [#allocation3], 4096
        $region36: #{tpu_custom_call.1} parent=27 // pred_fallthru
          _
        %162 = sfence
        %p163 = pneg %p46
        %p164 = pneg %p43
        %p165 = pneg %p72
        %p166 = pneg %p69
        %p167 = pneg %p100
        %p168 = pneg %p97
        %s169 = sand.u32 %s87, 1
        %s170 = scalar_lea.sflag [#allocation4], %s169
        %s171 = sand.u32 %s87, 1
        %s172 = smul.addr %s171, 336
        %s173 = scalar_lea.vmem [#allocation7], %s172
        %s174 = smul.u32 7, %s23
        %s175 = smul.u32 %s23, 7
        %s176 = sld [smem:[#allocation2]]
        %s177 = sld [smem:[#allocation2 + $0x1]]
        %s178 = sld [smem:[#allocation2 + $0x2]]
        %s179 = sld [smem:[#allocation2 + $0x3]]
        %s180 = sld [smem:[#allocation2 + $0x4]]
        %s181 = sld [smem:[#allocation2 + $0x5]]
        %s182 = sld [smem:[#allocation2 + $0x6]]
        %s183 = sld [smem:[#allocation2 + $0x7]]
        %s184 = sld [smem:[#allocation2 + $0x8]]
        %s185 = sld [smem:[#allocation2 + $0x9]]
        %s186 = sld [smem:[#allocation2 + $0xa]]
        %s187 = sld [smem:[#allocation2 + $0xb]]
        %s188 = sld [smem:[#allocation2 + $0xc]]
        %s189 = sld [smem:[#allocation2 + $0xd]]
        %s190 = sld [smem:[#allocation2 + $0xe]]
        %s191 = sld [smem:[#allocation2 + $0xf]]
        %s192 = sld [smem:[#allocation2 + $0x10]]
        %s193 = sld [smem:[#allocation2 + $0x11]]
        %s194 = sld [smem:[#allocation2 + $0x12]]
        %s195 = sld [smem:[#allocation2 + $0x13]]
        %s196 = sld [smem:[#allocation2 + $0x14]]
        %s197 = sld [smem:[#allocation2 + $0x15]]
        %s198 = sld [smem:[#allocation2 + $0x16]]
        %s199 = sld [smem:[#allocation2 + $0x17]]
        %s200 = sld [smem:[#allocation2 + $0x18]]
        %s201 = sld [smem:[#allocation2 + $0x19]]
        %s202 = sld [smem:[#allocation2 + $0x1a]]
        loop: start=0, step=1, limit=7
        $region37: #{tpu_custom_call.1} parent=27 // loop_pre_header
          _
        $region38: #{tpu_custom_call.1} parent=27 // loop_header
          %s204 = sphi 0, %s208
          %p205 = scmp.ge.s32.totalorder %s204, 7
        $region39: #{tpu_custom_call.1} parent=27 // loop_header_branch
          %207 = sbr.rel (%p205) target = $region43
        $region40: #{tpu_custom_call.1} parent=27 // loop_body
          %s209 = sadd.s32 %s175, %s204
          %s210 = smul.u32 %s209, 16
          %s211 = scalar_lea.vmem [#allocation6], %s210
          %v212 = vld [vmem:[%s211] sm:$0xff]
          %v213 = vld [vmem:[%s211 + $0x8] sm:$0xff]
          %v214 = vstv %s176
          %v215 = vmul.f32 %v214, %v212
          %v216 = vmul.f32 %v214, %v213
          %v217 = vadd.f32 %v215, 0.0
          %v218 = vadd.f32 %v216, 0.0
          %v219 = vstv %s185
          %v220 = vmul.f32 %v219, %v212
          %v221 = vmul.f32 %v219, %v213
          %v222 = vadd.f32 %v220, 0.0
          %v223 = vadd.f32 %v221, 0.0
          %v224 = vstv %s194
          %v225 = vmul.f32 %v224, %v212
          %v226 = vmul.f32 %v224, %v213
          %v227 = vadd.f32 %v225, 0.0
          %v228 = vadd.f32 %v226, 0.0
          %v229 = vstv %s177
          %v230 = vmul.f32 %v229, %v212
          %v231 = vmul.f32 %v229, %v213
          %vm234 = vcmask 1046528
          %v235 = vrot.slane %v230, 1
          %v236 = vrot.slane %v231, 1
          %v237 = vsel %vm234, %v235, %v236
          %v240 = vadd.f32 %v217, %v237
          %v241 = vadd.f32 %v218, %v236
          %v242 = vstv %s186
          %v243 = vmul.f32 %v242, %v212
          %v244 = vmul.f32 %v242, %v213
          %v247 = vrot.slane %v243, 1
          %v248 = vrot.slane %v244, 1
          %v249 = vsel %vm234, %v247, %v248
          %v252 = vadd.f32 %v222, %v249
          %v253 = vadd.f32 %v223, %v248
          %v254 = vstv %s195
          %v255 = vmul.f32 %v254, %v212
          %v256 = vmul.f32 %v254, %v213
          %v259 = vrot.slane %v255, 1
          %v260 = vrot.slane %v256, 1
          %v261 = vsel %vm234, %v259, %v260
          %v264 = vadd.f32 %v227, %v261
          %v265 = vadd.f32 %v228, %v260
          %v266 = vstv %s178
          %v267 = vmul.f32 %v266, %v212
          %v268 = vmul.f32 %v266, %v213
          %vm271 = vcmask 1045504
          %v272 = vrot.slane %v267, 2
          %v273 = vrot.slane %v268, 2
          %v274 = vsel %vm271, %v272, %v273
          %v277 = vadd.f32 %v240, %v274
          %v278 = vadd.f32 %v241, %v273
          %v279 = vstv %s187
          %v280 = vmul.f32 %v279, %v212
          %v281 = vmul.f32 %v279, %v213
          %v284 = vrot.slane %v280, 2
          %v285 = vrot.slane %v281, 2
          %v286 = vsel %vm271, %v284, %v285
          %v289 = vadd.f32 %v252, %v286
          %v290 = vadd.f32 %v253, %v285
          %v291 = vstv %s196
          %v292 = vmul.f32 %v291, %v212
          %v293 = vmul.f32 %v291, %v213
          %v296 = vrot.slane %v292, 2
          %v297 = vrot.slane %v293, 2
          %v298 = vsel %vm271, %v296, %v297
          %v301 = vadd.f32 %v264, %v298
          %v302 = vadd.f32 %v265, %v297
          %s303 = sadd.s32 %s209, 1
          %s304 = smul.u32 %s303, 16
          %s305 = scalar_lea.vmem [#allocation6], %s304
          %v306 = vld [vmem:[%s305] sm:$0xff]
          %v307 = vld [vmem:[%s305 + $0x8] sm:$0xff]
          %v308 = vstv %s179
          %v309 = vmul.f32 %v308, %v306
          %v310 = vmul.f32 %v308, %v307
          %v311 = vadd.f32 %v277, %v309
          %v312 = vadd.f32 %v278, %v310
          %v313 = vstv %s188
          %v314 = vmul.f32 %v313, %v306
          %v315 = vmul.f32 %v313, %v307
          %v316 = vadd.f32 %v289, %v314
          %v317 = vadd.f32 %v290, %v315
          %v318 = vstv %s197
          %v319 = vmul.f32 %v318, %v306
          %v320 = vmul.f32 %v318, %v307
          %v321 = vadd.f32 %v301, %v319
          %v322 = vadd.f32 %v302, %v320
          %v323 = vstv %s180
          %v324 = vmul.f32 %v323, %v306
          %v325 = vmul.f32 %v323, %v307
          %v328 = vrot.slane %v324, 1
          %v329 = vrot.slane %v325, 1
          %v330 = vsel %vm234, %v328, %v329
          %v333 = vadd.f32 %v311, %v330
          %v334 = vadd.f32 %v312, %v329
          %v335 = vstv %s189
          %v336 = vmul.f32 %v335, %v306
          %v337 = vmul.f32 %v335, %v307
          %v340 = vrot.slane %v336, 1
          %v341 = vrot.slane %v337, 1
          %v342 = vsel %vm234, %v340, %v341
          %v345 = vadd.f32 %v316, %v342
          %v346 = vadd.f32 %v317, %v341
          %v347 = vstv %s198
          %v348 = vmul.f32 %v347, %v306
          %v349 = vmul.f32 %v347, %v307
          %v352 = vrot.slane %v348, 1
          %v353 = vrot.slane %v349, 1
          %v354 = vsel %vm234, %v352, %v353
          %v357 = vadd.f32 %v321, %v354
          %v358 = vadd.f32 %v322, %v353
          %v359 = vstv %s181
          %v360 = vmul.f32 %v359, %v306
          %v361 = vmul.f32 %v359, %v307
          %v364 = vrot.slane %v360, 2
          %v365 = vrot.slane %v361, 2
          %v366 = vsel %vm271, %v364, %v365
          %v369 = vadd.f32 %v333, %v366
          %v370 = vadd.f32 %v334, %v365
          %v371 = vstv %s190
          %v372 = vmul.f32 %v371, %v306
          %v373 = vmul.f32 %v371, %v307
          %v376 = vrot.slane %v372, 2
          %v377 = vrot.slane %v373, 2
          %v378 = vsel %vm271, %v376, %v377
          %v381 = vadd.f32 %v345, %v378
          %v382 = vadd.f32 %v346, %v377
          %v383 = vstv %s199
          %v384 = vmul.f32 %v383, %v306
          %v385 = vmul.f32 %v383, %v307
          %v388 = vrot.slane %v384, 2
          %v389 = vrot.slane %v385, 2
          %v390 = vsel %vm271, %v388, %v389
          %v393 = vadd.f32 %v357, %v390
          %v394 = vadd.f32 %v358, %v389
          %s395 = sadd.s32 %s209, 2
          %s396 = smul.u32 %s395, 16
          %s397 = scalar_lea.vmem [#allocation6], %s396
          %v398 = vld [vmem:[%s397] sm:$0xff]
          %v399 = vld [vmem:[%s397 + $0x8] sm:$0xff]
          %v400 = vstv %s182
          %v401 = vmul.f32 %v400, %v398
          %v402 = vmul.f32 %v400, %v399
          %v403 = vadd.f32 %v369, %v401
          %v404 = vadd.f32 %v370, %v402
          %v405 = vstv %s191
          %v406 = vmul.f32 %v405, %v398
          %v407 = vmul.f32 %v405, %v399
          %v408 = vadd.f32 %v381, %v406
          %v409 = vadd.f32 %v382, %v407
          %v410 = vstv %s200
          %v411 = vmul.f32 %v410, %v398
          %v412 = vmul.f32 %v410, %v399
          %v413 = vadd.f32 %v393, %v411
          %v414 = vadd.f32 %v394, %v412
          %v415 = vstv %s183
          %v416 = vmul.f32 %v415, %v398
          %v417 = vmul.f32 %v415, %v399
          %v420 = vrot.slane %v416, 1
          %v421 = vrot.slane %v417, 1
          %v422 = vsel %vm234, %v420, %v421
          %v425 = vadd.f32 %v403, %v422
          %v426 = vadd.f32 %v404, %v421
          %v427 = vstv %s192
          %v428 = vmul.f32 %v427, %v398
          %v429 = vmul.f32 %v427, %v399
          %v432 = vrot.slane %v428, 1
          %v433 = vrot.slane %v429, 1
          %v434 = vsel %vm234, %v432, %v433
          %v437 = vadd.f32 %v408, %v434
          %v438 = vadd.f32 %v409, %v433
          %v439 = vstv %s201
          %v440 = vmul.f32 %v439, %v398
          %v441 = vmul.f32 %v439, %v399
          %v444 = vrot.slane %v440, 1
          %v445 = vrot.slane %v441, 1
          %v446 = vsel %vm234, %v444, %v445
          %v449 = vadd.f32 %v413, %v446
          %v450 = vadd.f32 %v414, %v445
          %v451 = vstv %s184
          %v452 = vmul.f32 %v451, %v398
          %v453 = vmul.f32 %v451, %v399
          %v456 = vrot.slane %v452, 2
          %v457 = vrot.slane %v453, 2
          %v458 = vsel %vm271, %v456, %v457
          %v461 = vadd.f32 %v425, %v458
          %v462 = vadd.f32 %v426, %v457
          %v463 = vstv %s193
          %v464 = vmul.f32 %v463, %v398
          %v465 = vmul.f32 %v463, %v399
          %v468 = vrot.slane %v464, 2
          %v469 = vrot.slane %v465, 2
          %v470 = vsel %vm271, %v468, %v469
          %v473 = vadd.f32 %v437, %v470
          %v474 = vadd.f32 %v438, %v469
          %v475 = vstv %s202
          %v476 = vmul.f32 %v475, %v398
          %v477 = vmul.f32 %v475, %v399
          %v480 = vrot.slane %v476, 2
          %v481 = vrot.slane %v477, 2
          %v482 = vsel %vm271, %v480, %v481
          %v485 = vadd.f32 %v449, %v482
          %v486 = vadd.f32 %v450, %v481
          %s487 = smul.u32 %s204, 48
          %s488 = scalar_lea.vmem %s173, %s487 [#allocation7]
          %489 = vst [vmem:[%s488] sm:$0xff] %v461
          %490 = vst [vmem:[%s488 + $0x8] sm:$0x3f] %v462
          %s491 = sadd.s32 16, %s487
          %s492 = scalar_lea.vmem %s173, %s491 [#allocation7]
          %493 = vst [vmem:[%s492] sm:$0xff] %v473
          %494 = vst [vmem:[%s492 + $0x8] sm:$0x3f] %v474
          %s495 = sadd.s32 32, %s487
          %s496 = scalar_lea.vmem %s173, %s495 [#allocation7]
          %497 = vst [vmem:[%s496] sm:$0xff] %v485
          %498 = vst [vmem:[%s496 + $0x8] sm:$0x3f] %v486
        $region41: #{tpu_custom_call.1} parent=27 // loop_footer
          %s208 = sadd.s32 1, %s204
        $region42: #{tpu_custom_call.1} parent=27 // loop_footer_branch
          %203 = sbr.rel target = $region38
        $region43: #{tpu_custom_call.1} parent=27 // loop_exit
          _
        %s499 = sand.u32 %s87, 1
        %s500 = scalar_lea.sflag [#allocation4], %s499
        %s501 = sand.u32 %s87, 1
        %s502 = smul.addr %s501, 336
        %s503 = scalar_lea.vmem [#allocation7], %s502
        // Predicated region
        $region44: #{tpu_custom_call.1} parent=27 // pred_check
          %p504 = pneg %p97
        $region45: #{tpu_custom_call.1} parent=27 // pred_check_branch
          %506 = sbr.rel (%p504) target = $region47
        $region46: #{tpu_custom_call.1} parent=27 // pred_region
          %s507 = smul.u32 7, %s23
          %509 = vsyncadd %s500, 0
          %s510 = smul.addr %s507, 6
          %s511 = sadd.s32 %s22, %s510
          %s512 = smul.addr %s511, 8
          %s513 = scalar_lea.hbm %s2, %s512
          %s514 = sshll.u32 %s503, 4
          %s515 = int_to_ptr.vmem [resolvable:$true] %s514
          %s516 = sshll.u32 %s513, 4
          %s517 = int_to_ptr.hbm [resolvable:$true] %s516
          %522 = dma.vmem_to_hbm [thread:$0]  %s515, 5376, %s517, %s500, 128, 128, 8
        $region47: #{tpu_custom_call.1} parent=27 // pred_fallthru
          _
      $region28: #{tpu_custom_call.1} parent=5 // pred_fallthru
        _
      %p523 = scmp.le.s32.totalorder 2, %s13
      // Predicated region
      $region48: #{tpu_custom_call.1} parent=5 // pred_check
        %p524 = pneg %p523
      $region49: #{tpu_custom_call.1} parent=5 // pred_check_branch
        %526 = sbr.rel (%p524) target = $region51
      $region50: #{tpu_custom_call.1} parent=5 // pred_region
        %s527 = ssub.s32 %s13, 2
        // Predicated region
        $region52: #{tpu_custom_call.1} parent=50 // pred_check
          %p528 = pneg %p103
        $region53: #{tpu_custom_call.1} parent=50 // pred_check_branch
          %530 = sbr.rel (%p528) target = $region55
        $region54: #{tpu_custom_call.1} parent=50 // pred_region
          %s531 = sand.u32 %s88, 1
          %s532 = scalar_lea.sflag [#allocation4], %s531
          %s533 = sand.u32 %s88, 1
          %s534 = smul.addr %s533, 336
          %s535 = scalar_lea.vmem [#allocation7], %s534
          %537 = dma.done %s532, 5376
        $region55: #{tpu_custom_call.1} parent=50 // pred_fallthru
          _
      $region51: #{tpu_custom_call.1} parent=5 // pred_fallthru
        _
    $region6: #{tpu_custom_call.1} parent=1 // loop_footer
      %s17 = sadd.s32 1, %s13
    $region7: #{tpu_custom_call.1} parent=1 // loop_footer_branch
      %12 = sbr.rel target = $region3
    $region8: #{tpu_custom_call.1} parent=1 // loop_exit
      _
    %538 = vsyncpa [#allocation3], 1
    %s539 = scalar_lea.sflag [#allocation3], 1
    %540 = vsyncpa %s539, 1
    %541 = vsyncpa [#allocation4], 1
    %s542 = scalar_lea.sflag [#allocation4], 1
    %543 = vsyncpa %s542, 1
    %544 = vsyncpa [#allocation5], 1
    %s545 = scalar_lea.sflag [#allocation5], 1
    %546 = vsyncpa %s545, 1

</llo_original>
